<compile_context>
chip_gen: v7x
topology: tpu7x:2x2x1
jax: 0.10.0
libtpu: 0.0.40
codegen_flags: <defaults>
</compile_context>

<pallas_src>
import jax
import jax.numpy as jnp
from jax.experimental import pallas as pl
from jax.experimental.pallas import tpu as pltpu


# ---------------------------------------------------------------------------
# Kernel
# ---------------------------------------------------------------------------
def _mlp_kernel(s0_ref, s1_ref,
                w1a_ref, w1b_ref, b1_ref,
                w2_ref, b2_ref,
                w3_ref, b3_ref,
                w4_ref, b4_ref,
                o_ref):
    """One batch tile of the 4-layer MLP on concat([s0, s1]) (concat never materialized).

    Feature-major: s0/s1 are (state_dim, tile_b), activations are (H, tile_b),
    so the batch sits on the 128-lane axis (lane-dense vregs, lane-dense MXU
    outputs, lane-dense final store).
    """
    cdt = w1a_ref.dtype          # MXU-input dtype: f32, or bf16 with f32 accumulation
    f32 = jnp.float32

    # Layer 1: Linear(2*state_dim -> H) + ReLU, concat folded into two dots.
    h = jnp.dot(w1a_ref[...], s0_ref[...], preferred_element_type=f32)
    h = h + jnp.dot(w1b_ref[...], s1_ref[...], preferred_element_type=f32)
    h = jnp.maximum(h + b1_ref[...], 0.0)            # bias (H,1) broadcasts along lanes

    # Layer 2: Linear(H -> H) + ReLU
    h = jnp.dot(w2_ref[...], h.astype(cdt), preferred_element_type=f32)
    h = jnp.maximum(h + b2_ref[...], 0.0)

    # Layer 3: Linear(H -> H) + ReLU
    h = jnp.dot(w3_ref[...], h.astype(cdt), preferred_element_type=f32)
    h = jnp.maximum(h + b3_ref[...], 0.0)

    # Layer 4: Linear(H -> 1), no activation, no squeeze (module returns (B, 1)).
    out = jnp.dot(w4_ref[...], h.astype(cdt), preferred_element_type=f32)
    o_ref[...] = (out + b4_ref[...]).astype(o_ref.dtype)   # (1, tile_b) lane-dense slab


# ---------------------------------------------------------------------------
# Tiling / VMEM helpers
# ---------------------------------------------------------------------------
def _auto_tile_b(B, *, max_tile=4096):
    """Largest 128-multiple batch tile <= max_tile that still yields >= 2 grid
    steps (when the batch allows) so v7x's two TensorCores both get work, with
    the tile balanced so padding waste on the last step stays small."""
    cdiv = lambda a, b: -(-a // b)
    b128 = cdiv(B, 128) * 128
    n_tiles = cdiv(b128, min(max_tile, b128))
    if b128 > 128:
        n_tiles = max(n_tiles, 2)
    return max(128, cdiv(cdiv(b128, n_tiles), 128) * 128)


def _pad(n, m):
    return -(-n // m) * m


def _sublane(itemsize):
    return {4: 8, 2: 16, 1: 32}.get(itemsize, 8)


def _vmem_need_bytes(tile_b, state_dim, hidden_dim, in_itemsize, w_itemsize):
    """VMEM footprint including (sublane, 128) tile padding."""
    sub_in, sub_w = _sublane(in_itemsize), _sublane(w_itemsize)

    def tile_bytes(rows, cols, itemsize, sub):
        return _pad(rows, sub) * _pad(cols, 128) * itemsize

    # 2 streamed inputs x 2 pipeline buffers; (state_dim, tile_b) tiles are lane-dense.
    in_bytes = 2 * 2 * tile_bytes(state_dim, tile_b, in_itemsize, sub_in)
    # (1, tile_b) f32 output, 2 buffers.
    out_bytes = 2 * tile_bytes(1, tile_b, 4, 8)
    # Resident params: constant index map, but the pipeline still double-buffers
    # them (x2).  (pipeline_mode=pl.Buffered(1) would halve this; irrelevant at H=32.)
    weights = (2 * tile_bytes(hidden_dim, state_dim, w_itemsize, sub_w)
               + 2 * tile_bytes(hidden_dim, hidden_dim, w_itemsize, sub_w)
               + tile_bytes(1, hidden_dim, w_itemsize, sub_w))
    biases = 3 * tile_bytes(hidden_dim, 1, 4, 8) + tile_bytes(1, 1, 4, 8)
    params = 2 * (weights + biases)
    # Live activation temporaries: ~4 f32 (H, tile_b) slabs (dots + bias/ReLU + casts).
    acts = 4 * tile_bytes(hidden_dim, tile_b, 4, 8)
    return in_bytes + out_bytes + params + acts


# ---------------------------------------------------------------------------
# Wrapper
# ---------------------------------------------------------------------------
def classifier_reward_forward(state0, state1, params, *, tile_b=None,
                              feature_major=True, vmem_cap_bytes=52 << 20):
    """Pallas forward: returns (B, 1) logits, matching the PyTorch module.

    state0/state1: (state_dim, B) when feature_major=True (preferred — emit this
    layout at the data producer), else (B, state_dim) (module-native layout;
    transposed here).  The streamed-input dtype follows the params' compute
    dtype, so bf16 params => bf16 activations in HBM (f32 accumulation in-kernel).

    vmem_cap_bytes defaults to 52 MiB (headroom under v7x's 64 MiB/TC); raise to
    ~96 MiB on v5e/v6e when scaling hidden_dim / tile_b.
    """
    w1a, w1b, b1, w2, b2, w3, b3, w4, b4 = params
    if not feature_major:
        # TODO(synk): in production, fuse this transpose into the data producer.
        state0, state1 = state0.T, state1.T
    io_dtype = w1a.dtype
    state0 = state0.astype(io_dtype)   # bf16 params => bf16 streamed inputs
    state1 = state1.astype(io_dtype)

    state_dim, B = state0.shape
    hidden_dim = w2.shape[0]

    if tile_b is None:
        tile_b = _auto_tile_b(B)
    assert tile_b % 128 == 0, "tile_b must be a multiple of 128 (lane axis)"

    n_tiles = pl.cdiv(B, tile_b)
    b_pad = n_tiles * tile_b
    if b_pad != B:                                   # pad batch (lane axis) to whole tiles
        pad = ((0, 0), (0, b_pad - B))
        state0 = jnp.pad(state0, pad)
        state1 = jnp.pad(state1, pad)

    x_spec = pl.BlockSpec((state_dim, tile_b), lambda i: (0, i))
    resident = lambda arr: pl.BlockSpec(arr.shape, lambda i: (0, 0))  # VMEM-resident params
    in_specs = [x_spec, x_spec] + [resident(p) for p in
                                   (w1a, w1b, b1, w2, b2, w3, b3, w4, b4)]
    out_spec = pl.BlockSpec((1, tile_b), lambda i: (0, i))            # lane-dense output slab

    flops = 2 * b_pad * (2 * state_dim * hidden_dim
                         + 2 * hidden_dim * hidden_dim + hidden_dim)
    bytes_accessed = (2 * state0.size * state0.dtype.itemsize
                      + sum(int(p.size) * p.dtype.itemsize for p in params)
                      + b_pad * 4)

    need = _vmem_need_bytes(tile_b, state_dim, hidden_dim,
                            state0.dtype.itemsize, w1a.dtype.itemsize)
    vmem_limit = int(min(max(need + (2 << 20), 32 << 20), vmem_cap_bytes))

    out = pl.pallas_call(
        _mlp_kernel,
        out_shape=jax.ShapeDtypeStruct((1, b_pad), jnp.float32),
        grid=(n_tiles,),
        in_specs=in_specs,
        out_specs=out_spec,
        compiler_params=pltpu.CompilerParams(
            dimension_semantics=("parallel",),       # v7x: shard batch tiles over both TCs
            vmem_limit_bytes=vmem_limit),
        cost_estimate=pl.CostEstimate(flops=int(flops), transcendentals=0,
                                      bytes_accessed=int(bytes_accessed)),
    )(state0, state1, w1a, w1b, b1, w2, b2, w3, b3, w4, b4)

    # (1, b_pad) -> (B, 1): pure layout plumbing in the wrapper.
    return out.reshape(b_pad, 1)[:B]


# ---------------------------------------------------------------------------
# Params / reference
# ---------------------------------------------------------------------------
def init_params(key, state_dim, hidden_dim, output_dim=1, compute_dtype=jnp.float32):
    """Deterministic synthetic init (PyTorch-style uniform).

    Weights stored in nn.Linear-native (out, in) layout in `compute_dtype`
    (f32, or bf16 => bf16 streamed activations + ~2x less HBM traffic; f32
    accumulation in-kernel).  Biases stay f32 as (out, 1) columns for the
    feature-major lane broadcast.  W1 is split into (W1a, W1b) along its input
    axis so the kernel never materializes concat([s0, s1]).
    """
    in_dim = state_dim * 2                        # ClassifierRewardModel doubles state_dim
    dims = [(in_dim, hidden_dim), (hidden_dim, hidden_dim),
            (hidden_dim, hidden_dim), (hidden_dim, output_dim)]
    params = []
    for i, (din, dout) in enumerate(dims):
        kw, kb, key = jax.random.split(key, 3)
        bound = 1.0 / (din ** 0.5)
        w = jax.random.uniform(kw, (dout, din), jnp.float32, -bound, bound)
        b = jax.random.uniform(kb, (dout, 1), jnp.float32, -bound, bound)
        w = w.astype(compute_dtype)
        if i == 0:
            params.extend([w[:, :state_dim], w[:, state_dim:], b])   # split W1
        else:
            params.extend([w, b])
    return tuple(params)


def reference_forward(state0, state1, params):
    """Module-style reference (concat + full W1) on batch-major (B, state_dim)
    inputs, mirroring the kernel's dtype policy."""
    w1a, w1b, b1, w2, b2, w3, b3, w4, b4 = params
    cdt = w1a.dtype
    f32 = jnp.float32
    w1 = jnp.concatenate([w1a, w1b], axis=1)                          # (H, 2*sd)
    x = jnp.concatenate([state0, state1], axis=-1).astype(cdt)
    h = jnp.maximum(jnp.dot(x, w1.T, preferred_element_type=f32) + b1.T, 0.0)
    h = jnp.maximum(jnp.dot(h.astype(cdt), w2.T, preferred_element_type=f32) + b2.T, 0.0)
    h = jnp.maximum(jnp.dot(h.astype(cdt), w3.T, preferred_element_type=f32) + b3.T, 0.0)
    return jnp.dot(h.astype(cdt), w4.T, preferred_element_type=f32) + b4.T   # (B, 1)


# ---------------------------------------------------------------------------
if __name__ == "__main__":
    B, state_dim, hidden_dim = 8, 16, 32

    key = jax.random.PRNGKey(0)
    k0, k1, kp = jax.random.split(key, 3)
    # Inputs produced directly in feature-major (state_dim, B) layout — in real
    # use the data producer emits this layout, so no wrapper-side transpose.
    s0_f = jax.random.normal(k0, (state_dim, B), jnp.float32)
    s1_f = jax.random.normal(k1, (state_dim, B), jnp.float32)

    # f32 path: strict check against the module-style reference.
    params_f32 = init_params(kp, state_dim, hidden_dim, compute_dtype=jnp.float32)
    out = jax.block_until_ready(classifier_reward_forward(s0_f, s1_f, params_f32))
    ref = reference_forward(s0_f.T, s1_f.T, params_f32)
    assert out.shape == (B, 1)
    assert jnp.allclose(out, ref, atol=1e-4, rtol=1e-4)

    # bf16 I/O path (bf16 params => bf16 streamed activations, f32 accumulation).
    params_bf16 = init_params(kp, state_dim, hidden_dim, compute_dtype=jnp.bfloat16)
    out_bf16 = jax.block_until_ready(classifier_reward_forward(s0_f, s1_f, params_bf16))
    ref_bf16 = reference_forward(s0_f.T, s1_f.T, params_bf16)
    assert out_bf16.shape == (B, 1)
    assert jnp.allclose(out_bf16, ref_bf16, atol=2e-2, rtol=2e-2)

    # Padding / multi-tile path: B not a multiple of 128 -> auto tile 256, grid of 2.
    B2 = 300
    kb0, kb1 = jax.random.split(jax.random.PRNGKey(1))
    t0 = jax.random.normal(kb0, (state_dim, B2), jnp.float32)
    t1 = jax.random.normal(kb1, (state_dim, B2), jnp.float32)
    out2 = jax.block_until_ready(classifier_reward_forward(t0, t1, params_f32))
    ref2 = reference_forward(t0.T, t1.T, params_f32)
    assert out2.shape == (B2, 1)
    assert jnp.allclose(out2, ref2, atol=1e-4, rtol=1e-4)

    # TODO(synk): preference_logp (softplus of +/- logits) is left to plain JAX glue;
    # only the module's forward() is implemented as a kernel.
    print("KERNEL_OK")
</pallas_src>

<mosaic_0001>
module attributes {stable_mosaic.version = 11 : i64} {
  func.func @_mlp_kernel(%arg0: i32, %arg1: memref<16x128xf32, #tpu.memory_space<vmem>>, %arg2: memref<16x128xf32, #tpu.memory_space<vmem>>, %arg3: memref<32x16xf32, #tpu.memory_space<vmem>>, %arg4: memref<32x16xf32, #tpu.memory_space<vmem>>, %arg5: memref<32x1xf32, #tpu.memory_space<vmem>>, %arg6: memref<32x32xf32, #tpu.memory_space<vmem>>, %arg7: memref<32x1xf32, #tpu.memory_space<vmem>>, %arg8: memref<32x32xf32, #tpu.memory_space<vmem>>, %arg9: memref<32x1xf32, #tpu.memory_space<vmem>>, %arg10: memref<1x32xf32, #tpu.memory_space<vmem>>, %arg11: memref<1x1xf32, #tpu.memory_space<vmem>>, %arg12: memref<1x128xf32, #tpu.memory_space<vmem>>) attributes {dimension_semantics = [#tpu.dimension_semantics<parallel>], iteration_bounds = array<i64: 1>, scalar_prefetch = 0 : i64, scratch_operands = 0 : i64, tpu.core_type = #tpu.core_type<tc>, window_params = [{transform_indices = @transform_0, window_bounds = array<i64: 16, 128>}, {transform_indices = @transform_1, window_bounds = array<i64: 16, 128>}, {pipeline_mode = #tpu.pipeline_mode<synchronous>, transform_indices = @transform_2, window_bounds = array<i64: 32, 16>}, {pipeline_mode = #tpu.pipeline_mode<synchronous>, transform_indices = @transform_3, window_bounds = array<i64: 32, 16>}, {pipeline_mode = #tpu.pipeline_mode<synchronous>, transform_indices = @transform_4, window_bounds = array<i64: 32, 1>}, {pipeline_mode = #tpu.pipeline_mode<synchronous>, transform_indices = @transform_5, window_bounds = array<i64: 32, 32>}, {pipeline_mode = #tpu.pipeline_mode<synchronous>, transform_indices = @transform_6, window_bounds = array<i64: 32, 1>}, {pipeline_mode = #tpu.pipeline_mode<synchronous>, transform_indices = @transform_7, window_bounds = array<i64: 32, 32>}, {pipeline_mode = #tpu.pipeline_mode<synchronous>, transform_indices = @transform_8, window_bounds = array<i64: 32, 1>}, {pipeline_mode = #tpu.pipeline_mode<synchronous>, transform_indices = @transform_9, window_bounds = array<i64: 1, 32>}, {pipeline_mode = #tpu.pipeline_mode<synchronous>, transform_indices = @transform_10, window_bounds = array<i64: 1, 1>}, {transform_indices = @transform_11, window_bounds = array<i64: 1, 128>}]} {
    %c0 = arith.constant 0 : index
    %c0_0 = arith.constant 0 : index
    %0 = vector.load %arg3[%c0, %c0_0] : memref<32x16xf32, #tpu.memory_space<vmem>>, vector<32x16xf32>
    %c0_1 = arith.constant 0 : index
    %c0_2 = arith.constant 0 : index
    %1 = vector.load %arg1[%c0_1, %c0_2] : memref<16x128xf32, #tpu.memory_space<vmem>>, vector<16x128xf32>
    %cst = arith.constant dense<0.000000e+00> : vector<32x128xf32>
    %2 = tpu.matmul %0, %1, %cst {dimension_numbers = #tpu.dot_dimension_numbers<[1], [0], [0], [1], [0, 0, 1, 1], [], []>} : vector<32x16xf32>, vector<16x128xf32>, vector<32x128xf32> -> vector<32x128xf32>
    %c0_3 = arith.constant 0 : index
    %c0_4 = arith.constant 0 : index
    %3 = vector.load %arg4[%c0_3, %c0_4] : memref<32x16xf32, #tpu.memory_space<vmem>>, vector<32x16xf32>
    %c0_5 = arith.constant 0 : index
    %c0_6 = arith.constant 0 : index
    %4 = vector.load %arg2[%c0_5, %c0_6] : memref<16x128xf32, #tpu.memory_space<vmem>>, vector<16x128xf32>
    %cst_7 = arith.constant dense<0.000000e+00> : vector<32x128xf32>
    %5 = tpu.matmul %3, %4, %cst_7 {dimension_numbers = #tpu.dot_dimension_numbers<[1], [0], [0], [1], [0, 0, 1, 1], [], []>} : vector<32x16xf32>, vector<16x128xf32>, vector<32x128xf32> -> vector<32x128xf32>
    %6 = arith.addf %2, %5 : vector<32x128xf32>
    %c0_8 = arith.constant 0 : index
    %c0_9 = arith.constant 0 : index
    %7 = vector.load %arg5[%c0_8, %c0_9] : memref<32x1xf32, #tpu.memory_space<vmem>>, vector<32x1xf32>
    %8 = vector.broadcast %7 : vector<32x1xf32> to vector<32x128xf32>
    %9 = arith.addf %6, %8 : vector<32x128xf32>
    %cst_10 = arith.constant 0.000000e+00 : f32
    %10 = vector.broadcast %cst_10 : f32 to vector<32x128xf32>
    %11 = arith.maximumf %9, %10 : vector<32x128xf32>
    %c0_11 = arith.constant 0 : index
    %c0_12 = arith.constant 0 : index
    %12 = vector.load %arg6[%c0_11, %c0_12] : memref<32x32xf32, #tpu.memory_space<vmem>>, vector<32x32xf32>
    %cst_13 = arith.constant dense<0.000000e+00> : vector<32x128xf32>
    %13 = tpu.matmul %12, %11, %cst_13 {dimension_numbers = #tpu.dot_dimension_numbers<[1], [0], [0], [1], [0, 0, 1, 1], [], []>} : vector<32x32xf32>, vector<32x128xf32>, vector<32x128xf32> -> vector<32x128xf32>
    %c0_14 = arith.constant 0 : index
    %c0_15 = arith.constant 0 : index
    %14 = vector.load %arg7[%c0_14, %c0_15] : memref<32x1xf32, #tpu.memory_space<vmem>>, vector<32x1xf32>
    %15 = vector.broadcast %14 : vector<32x1xf32> to vector<32x128xf32>
    %16 = arith.addf %13, %15 : vector<32x128xf32>
    %cst_16 = arith.constant 0.000000e+00 : f32
    %17 = vector.broadcast %cst_16 : f32 to vector<32x128xf32>
    %18 = arith.maximumf %16, %17 : vector<32x128xf32>
    %c0_17 = arith.constant 0 : index
    %c0_18 = arith.constant 0 : index
    %19 = vector.load %arg8[%c0_17, %c0_18] : memref<32x32xf32, #tpu.memory_space<vmem>>, vector<32x32xf32>
    %cst_19 = arith.constant dense<0.000000e+00> : vector<32x128xf32>
    %20 = tpu.matmul %19, %18, %cst_19 {dimension_numbers = #tpu.dot_dimension_numbers<[1], [0], [0], [1], [0, 0, 1, 1], [], []>} : vector<32x32xf32>, vector<32x128xf32>, vector<32x128xf32> -> vector<32x128xf32>
    %c0_20 = arith.constant 0 : index
    %c0_21 = arith.constant 0 : index
    %21 = vector.load %arg9[%c0_20, %c0_21] : memref<32x1xf32, #tpu.memory_space<vmem>>, vector<32x1xf32>
    %22 = vector.broadcast %21 : vector<32x1xf32> to vector<32x128xf32>
    %23 = arith.addf %20, %22 : vector<32x128xf32>
    %cst_22 = arith.constant 0.000000e+00 : f32
    %24 = vector.broadcast %cst_22 : f32 to vector<32x128xf32>
    %25 = arith.maximumf %23, %24 : vector<32x128xf32>
    %c0_23 = arith.constant 0 : index
    %c0_24 = arith.constant 0 : index
    %26 = vector.load %arg10[%c0_23, %c0_24] : memref<1x32xf32, #tpu.memory_space<vmem>>, vector<1x32xf32>
    %cst_25 = arith.constant dense<0.000000e+00> : vector<1x128xf32>
    %27 = tpu.matmul %26, %25, %cst_25 {dimension_numbers = #tpu.dot_dimension_numbers<[1], [0], [0], [1], [0, 0, 1, 1], [], []>} : vector<1x32xf32>, vector<32x128xf32>, vector<1x128xf32> -> vector<1x128xf32>
    %c0_26 = arith.constant 0 : index
    %c0_27 = arith.constant 0 : index
    %28 = vector.load %arg11[%c0_26, %c0_27] : memref<1x1xf32, #tpu.memory_space<vmem>>, vector<1x1xf32>
    %29 = vector.broadcast %28 : vector<1x1xf32> to vector<1x128xf32>
    %30 = arith.addf %27, %29 : vector<1x128xf32>
    %c0_28 = arith.constant 0 : index
    %c0_29 = arith.constant 0 : index
    %31 = vector.load %arg12[%c0_28, %c0_29] : memref<1x128xf32, #tpu.memory_space<vmem>>, vector<1x128xf32>
    tpu.vector_store %arg12[%c0_28, %c0_29], %30 {strides = array<i32>} : memref<1x128xf32, #tpu.memory_space<vmem>>, vector<1x128xf32>,
    return
  }
  func.func @transform_0(%arg0: i32) -> (i32, i32) {
    %c0_i32 = arith.constant 0 : i32
    %c0_i32_0 = arith.constant 0 : i32
    return %c0_i32, %arg0 : i32, i32
  }
  func.func @transform_1(%arg0: i32) -> (i32, i32) {
    %c0_i32 = arith.constant 0 : i32
    %c0_i32_0 = arith.constant 0 : i32
    return %c0_i32, %arg0 : i32, i32
  }
  func.func @transform_2(%arg0: i32) -> (i32, i32) {
    %c0_i32 = arith.constant 0 : i32
    %c0_i32_0 = arith.constant 0 : i32
    %c0_i32_1 = arith.constant 0 : i32
    return %c0_i32, %c0_i32_0 : i32, i32
  }
  func.func @transform_3(%arg0: i32) -> (i32, i32) {
    %c0_i32 = arith.constant 0 : i32
    %c0_i32_0 = arith.constant 0 : i32
    %c0_i32_1 = arith.constant 0 : i32
    return %c0_i32, %c0_i32_0 : i32, i32
  }
  func.func @transform_4(%arg0: i32) -> (i32, i32) {
    %c0_i32 = arith.constant 0 : i32
    %c0_i32_0 = arith.constant 0 : i32
    %c0_i32_1 = arith.constant 0 : i32
    return %c0_i32, %c0_i32_0 : i32, i32
  }
  func.func @transform_5(%arg0: i32) -> (i32, i32) {
    %c0_i32 = arith.constant 0 : i32
    %c0_i32_0 = arith.constant 0 : i32
    %c0_i32_1 = arith.constant 0 : i32
    return %c0_i32, %c0_i32_0 : i32, i32
  }
  func.func @transform_6(%arg0: i32) -> (i32, i32) {
    %c0_i32 = arith.constant 0 : i32
    %c0_i32_0 = arith.constant 0 : i32
    %c0_i32_1 = arith.constant 0 : i32
    return %c0_i32, %c0_i32_0 : i32, i32
  }
  func.func @transform_7(%arg0: i32) -> (i32, i32) {
    %c0_i32 = arith.constant 0 : i32
    %c0_i32_0 = arith.constant 0 : i32
    %c0_i32_1 = arith.constant 0 : i32
    return %c0_i32, %c0_i32_0 : i32, i32
  }
  func.func @transform_8(%arg0: i32) -> (i32, i32) {
    %c0_i32 = arith.constant 0 : i32
    %c0_i32_0 = arith.constant 0 : i32
    %c0_i32_1 = arith.constant 0 : i32
    return %c0_i32, %c0_i32_0 : i32, i32
  }
  func.func @transform_9(%arg0: i32) -> (i32, i32) {
    %c0_i32 = arith.constant 0 : i32
    %c0_i32_0 = arith.constant 0 : i32
    %c0_i32_1 = arith.constant 0 : i32
    return %c0_i32, %c0_i32_0 : i32, i32
  }
  func.func @transform_10(%arg0: i32) -> (i32, i32) {
    %c0_i32 = arith.constant 0 : i32
    %c0_i32_0 = arith.constant 0 : i32
    %c0_i32_1 = arith.constant 0 : i32
    return %c0_i32, %c0_i32_0 : i32, i32
  }
  func.func @transform_11(%arg0: i32) -> (i32, i32) {
    %c0_i32 = arith.constant 0 : i32
    %c0_i32_0 = arith.constant 0 : i32
    return %c0_i32, %arg0 : i32, i32
  }
}

</mosaic_0001>

<llo_original>
// kernel: tpu_custom_call.1
$region0: #{tpu_custom_call.1}
  #allocation0 [shape = 'u32[]', space=smem, size = 0x4, offset = 0x4, fixed_abs, tag = 'smem constant byte address 0x4 - core index']
  #allocation1 [shape = 'u32[144,128]{1,0:T(1,128)}', space=vmem, size = 0x12000, scoped, tag = 'internal scratch']
  #allocation2 [shape = 'f32[1,1]{1,0:T(1,128)S(1)}', space=vmem, size = 0x200, scoped, tag = 'scoped memory for tpu_custom_call.1']
  %s0 = inlined_call_operand.vmem [shape: f32[16,128], index: 0, kind: input, shape index: {}]
  %s1 = inlined_call_operand.vmem [shape: f32[16,128], index: 1, kind: input, shape index: {}]
  %s2 = inlined_call_operand.vmem [shape: f32[32,16], index: 2, kind: input, shape index: {}]
  %s3 = inlined_call_operand.vmem [shape: f32[32,16], index: 3, kind: input, shape index: {}]
  %s4 = inlined_call_operand.vmem [shape: f32[32,1], index: 4, kind: input, shape index: {}]
  %s5 = inlined_call_operand.vmem [shape: f32[32,32], index: 5, kind: input, shape index: {}]
  %s6 = inlined_call_operand.vmem [shape: f32[32,1], index: 6, kind: input, shape index: {}]
  %s7 = inlined_call_operand.vmem [shape: f32[32,32], index: 7, kind: input, shape index: {}]
  %s8 = inlined_call_operand.vmem [shape: f32[32,1], index: 8, kind: input, shape index: {}]
  %s9 = inlined_call_operand.vmem [shape: f32[1,32], index: 9, kind: input, shape index: {}]
  %s10 = inlined_call_operand.<no memory space> [shape: f32[1,1], index: 10, kind: input, shape index: {}]
  %s11 = inlined_call_operand.hbm [shape: f32[1,128], index: 11, kind: output, shape index: {}]
  %s12 = sld [smem:[#allocation0]]
  $region54: #{tpu_custom_call.1} parent=0
    _
  %s14 = ssub.s32 1, %s12
  %s15 = scalar_select 0, %s14, %s12
  %v16 = vstv %s10
  %17 = vst [vmem:[#allocation2] sm:$0x1] %v16
  $region1: #{tpu_custom_call.1} parent=0
    #allocation3 [shape = 'u8[512]{0}', space=vmem, size = 0x400, scoped, tag = 'output window, operand 0, single buffered']
    #allocation4 [shape = 's32[1]{0}', space=sflag, size = 0x4, scoped, tag = 'scoped memory for tpu_custom_call.1']
    %18 = vsyncpa [#allocation4], 0
    // Predicated region
    $region2: #{tpu_custom_call.1} parent=1 // pred_check
      _
    $region3: #{tpu_custom_call.1} parent=1 // pred_check_branch
      %20 = sbr.rel (0) target = $region5
    $region4: #{tpu_custom_call.1} parent=1 // pred_region
      _
    $region5: #{tpu_custom_call.1} parent=1 // pred_fallthru
      _
    // Predicated region
    $region6: #{tpu_custom_call.1} parent=1 // pred_check
      _
    $region7: #{tpu_custom_call.1} parent=1 // pred_check_branch
      %22 = sbr.rel (0) target = $region9
    $region8: #{tpu_custom_call.1} parent=1 // pred_region
      _
    $region9: #{tpu_custom_call.1} parent=1 // pred_fallthru
      _
    // Predicated region
    $region10: #{tpu_custom_call.1} parent=1 // pred_check
      _
    $region11: #{tpu_custom_call.1} parent=1 // pred_check_branch
      %24 = sbr.rel (0) target = $region13
    $region12: #{tpu_custom_call.1} parent=1 // pred_region
      _
    $region13: #{tpu_custom_call.1} parent=1 // pred_fallthru
      _
    // Predicated region
    $region14: #{tpu_custom_call.1} parent=1 // pred_check
      _
    $region15: #{tpu_custom_call.1} parent=1 // pred_check_branch
      %26 = sbr.rel (0) target = $region17
    $region16: #{tpu_custom_call.1} parent=1 // pred_region
      _
    $region17: #{tpu_custom_call.1} parent=1 // pred_fallthru
      _
    // Predicated region
    $region18: #{tpu_custom_call.1} parent=1 // pred_check
      _
    $region19: #{tpu_custom_call.1} parent=1 // pred_check_branch
      %28 = sbr.rel (0) target = $region21
    $region20: #{tpu_custom_call.1} parent=1 // pred_region
      _
    $region21: #{tpu_custom_call.1} parent=1 // pred_fallthru
      _
    // Predicated region
    $region22: #{tpu_custom_call.1} parent=1 // pred_check
      _
    $region23: #{tpu_custom_call.1} parent=1 // pred_check_branch
      %30 = sbr.rel (0) target = $region25
    $region24: #{tpu_custom_call.1} parent=1 // pred_region
      _
    $region25: #{tpu_custom_call.1} parent=1 // pred_fallthru
      _
    // Predicated region
    $region26: #{tpu_custom_call.1} parent=1 // pred_check
      _
    $region27: #{tpu_custom_call.1} parent=1 // pred_check_branch
      %32 = sbr.rel (0) target = $region29
    $region28: #{tpu_custom_call.1} parent=1 // pred_region
      _
    $region29: #{tpu_custom_call.1} parent=1 // pred_fallthru
      _
    // Predicated region
    $region30: #{tpu_custom_call.1} parent=1 // pred_check
      _
    $region31: #{tpu_custom_call.1} parent=1 // pred_check_branch
      %34 = sbr.rel (0) target = $region33
    $region32: #{tpu_custom_call.1} parent=1 // pred_region
      _
    $region33: #{tpu_custom_call.1} parent=1 // pred_fallthru
      _
    // Predicated region
    $region34: #{tpu_custom_call.1} parent=1 // pred_check
      _
    $region35: #{tpu_custom_call.1} parent=1 // pred_check_branch
      %36 = sbr.rel (0) target = $region37
    $region36: #{tpu_custom_call.1} parent=1 // pred_region
      _
    $region37: #{tpu_custom_call.1} parent=1 // pred_fallthru
      _
    // Predicated region
    $region38: #{tpu_custom_call.1} parent=1 // pred_check
      _
    $region39: #{tpu_custom_call.1} parent=1 // pred_check_branch
      %38 = sbr.rel (0) target = $region41
    $region40: #{tpu_custom_call.1} parent=1 // pred_region
      _
    $region41: #{tpu_custom_call.1} parent=1 // pred_fallthru
      _
    // Predicated region
    $region42: #{tpu_custom_call.1} parent=1 // pred_check
      _
    $region43: #{tpu_custom_call.1} parent=1 // pred_check_branch
      %40 = sbr.rel (0) target = $region45
    $region44: #{tpu_custom_call.1} parent=1 // pred_region
      _
    $region45: #{tpu_custom_call.1} parent=1 // pred_fallthru
      _
    %v41 = vld [vmem:[%s2] sm:$0xff]
    %v42 = vld [vmem:[%s2 + $0x8] sm:$0xff]
    %v43 = vld [vmem:[%s2 + $0x10] sm:$0xff]
    %v44 = vld [vmem:[%s2 + $0x18] sm:$0xff]
    %v45 = vld [vmem:[%s0] sm:$0xff]
    %v46 = vld [vmem:[%s0 + $0x8] sm:$0xff]
    %v47 = vld [vmem:[%s3] sm:$0xff]
    %v48 = vld [vmem:[%s3 + $0x8] sm:$0xff]
    %v49 = vld [vmem:[%s3 + $0x10] sm:$0xff]
    %v50 = vld [vmem:[%s3 + $0x18] sm:$0xff]
    %v51 = vld [vmem:[%s1] sm:$0xff]
    %v52 = vld [vmem:[%s1 + $0x8] sm:$0xff]
    %vm53 = vcmask 130048
    %v55 = vsel %vm53, %v47, 0
    %v58 = vsel %vm53, %v48, 0
    %v61 = vsel %vm53, %v49, 0
    %v64 = vsel %vm53, %v50, 0
    %66 = vmatprep.subr.mxu0 0.0
    %67 = vmatpush1.msra.mxu0 %v51
    %68 = vmatprep.subr.mxu0 0.0
    %69 = vmatpush1.msra.mxu0 %v52
    %70 = vmatprep.subr.mxu0 0.0
    %71 = vmatpush1.msra.mxu0 0.0
    %72 = vmatprep.subr.mxu0 0.0
    %73 = vmatpush1.msra.mxu0 0.0
    %74 = vmatprep.subr.mxu0 0.0
    %75 = vmatpush1.msra.mxu0 0.0
    %76 = vmatprep.subr.mxu0 0.0
    %77 = vmatpush1.msra.mxu0 0.0
    %78 = vmatprep.subr.mxu0 0.0
    %79 = vmatpush1.msra.mxu0 0.0
    %80 = vmatprep.subr.mxu0 0.0
    %81 = vmatpush1.msra.mxu0 0.0
    %82 = vmatprep.subr.mxu0 0.0
    %83 = vmatpush1.msra.mxu0 0.0
    %84 = vmatprep.subr.mxu0 0.0
    %85 = vmatpush1.msra.mxu0 0.0
    %86 = vmatprep.subr.mxu0 0.0
    %87 = vmatpush1.msra.mxu0 0.0
    %88 = vmatprep.subr.mxu0 0.0
    %89 = vmatpush1.msra.mxu0 0.0
    %90 = vmatprep.subr.mxu0 0.0
    %91 = vmatpush1.msra.mxu0 0.0
    %92 = vmatprep.subr.mxu0 0.0
    %93 = vmatpush1.msra.mxu0 0.0
    %94 = vmatprep.subr.mxu0 0.0
    %95 = vmatpush1.msra.mxu0 0.0
    %96 = vmatprep.subr.mxu0 0.0
    %97 = vmatpush1.msra.mxu0 0.0
    %98 = vmatprep.subr.mxu0 0.0
    %99 = vmatpush1.msra.mxu0 0.0
    %100 = vmatprep.subr.mxu0 0.0
    %101 = vmatpush1.msra.mxu0 0.0
    %102 = vmatprep.subr.mxu0 0.0
    %103 = vmatpush1.msra.mxu0 0.0
    %104 = vmatprep.subr.mxu0 0.0
    %105 = vmatpush1.msra.mxu0 0.0
    %106 = vmatprep.subr.mxu0 0.0
    %107 = vmatpush1.msra.mxu0 0.0
    %108 = vmatprep.subr.mxu0 0.0
    %109 = vmatpush1.msra.mxu0 0.0
    %110 = vmatprep.subr.mxu0 0.0
    %111 = vmatpush1.msra.mxu0 0.0
    %112 = vmatprep.subr.mxu0 0.0
    %113 = vmatpush1.msra.mxu0 0.0
    %114 = vmatprep.subr.mxu0 0.0
    %115 = vmatpush1.msra.mxu0 0.0
    %116 = vmatprep.subr.mxu0 0.0
    %117 = vmatpush1.msra.mxu0 0.0
    %118 = vmatprep.subr.mxu0 0.0
    %119 = vmatpush1.msra.mxu0 0.0
    %120 = vmatprep.subr.mxu0 0.0
    %121 = vmatpush1.msra.mxu0 0.0
    %122 = vmatprep.subr.mxu0 0.0
    %123 = vmatpush1.msra.mxu0 0.0
    %124 = vmatprep.subr.mxu0 0.0
    %125 = vmatpush1.msra.mxu0 0.0
    %126 = vmatprep.subr.mxu0 0.0
    %127 = vmatpush1.msra.mxu0 0.0
    %128 = vmatprep.subr.mxu0 0.0
    %129 = vmatpush1.msra.mxu0 0.0
    %130 = vmatprep.mubr.f32.mxu0 0.0
    %131 = vmatmul.mubr.f32.gmra.mrb[0].mxu0 %v55
    %v132 = vpop.f32.mrb[0].mxu0
    %v133 = vadd.f32 0.0, %v132
    %v134 = vpop.f32.mrb[0].mxu0
    %135 = vmatprep.mubr.f32.mxu0 0.0
    %136 = vmatmul.mubr.f32.gmra.mrb[0].mxu0 %v58
    %v137 = vpop.f32.mrb[0].mxu0
    %v138 = vadd.f32 0.0, %v137
    %v139 = vpop.f32.mrb[0].mxu0
    %140 = vmatprep.mubr.f32.mxu0 0.0
    %141 = vmatmul.mubr.f32.gmra.mrb[0].mxu0 %v61
    %v142 = vpop.f32.mrb[0].mxu0
    %v143 = vadd.f32 0.0, %v142
    %v144 = vpop.f32.mrb[0].mxu0
    %145 = vmatprep.mubr.f32.mxu0 0.0
    %146 = vmatmul.mubr.f32.gmra.mrb[0].mxu0 %v64
    %v147 = vpop.f32.mrb[0].mxu0
    %v148 = vadd.f32 0.0, %v147
    %v149 = vpop.f32.mrb[0].mxu0
    %150 = vdwg.mxu0
    %v152 = vsel %vm53, %v41, 0
    %v155 = vsel %vm53, %v42, 0
    %v158 = vsel %vm53, %v43, 0
    %v161 = vsel %vm53, %v44, 0
    %163 = vmatprep.subr.mxu0 0.0
    %164 = vmatpush1.msra.mxu0 %v45
    %165 = vmatprep.subr.mxu0 0.0
    %166 = vmatpush1.msra.mxu0 %v46
    %167 = vmatprep.subr.mxu0 0.0
    %168 = vmatpush1.msra.mxu0 0.0
    %169 = vmatprep.subr.mxu0 0.0
    %170 = vmatpush1.msra.mxu0 0.0
    %171 = vmatprep.subr.mxu0 0.0
    %172 = vmatpush1.msra.mxu0 0.0
    %173 = vmatprep.subr.mxu0 0.0
    %174 = vmatpush1.msra.mxu0 0.0
    %175 = vmatprep.subr.mxu0 0.0
    %176 = vmatpush1.msra.mxu0 0.0
    %177 = vmatprep.subr.mxu0 0.0
    %178 = vmatpush1.msra.mxu0 0.0
    %179 = vmatprep.subr.mxu0 0.0
    %180 = vmatpush1.msra.mxu0 0.0
    %181 = vmatprep.subr.mxu0 0.0
    %182 = vmatpush1.msra.mxu0 0.0
    %183 = vmatprep.subr.mxu0 0.0
    %184 = vmatpush1.msra.mxu0 0.0
    %185 = vmatprep.subr.mxu0 0.0
    %186 = vmatpush1.msra.mxu0 0.0
    %187 = vmatprep.subr.mxu0 0.0
    %188 = vmatpush1.msra.mxu0 0.0
    %189 = vmatprep.subr.mxu0 0.0
    %190 = vmatpush1.msra.mxu0 0.0
    %191 = vmatprep.subr.mxu0 0.0
    %192 = vmatpush1.msra.mxu0 0.0
    %193 = vmatprep.subr.mxu0 0.0
    %194 = vmatpush1.msra.mxu0 0.0
    %195 = vmatprep.subr.mxu0 0.0
    %196 = vmatpush1.msra.mxu0 0.0
    %197 = vmatprep.subr.mxu0 0.0
    %198 = vmatpush1.msra.mxu0 0.0
    %199 = vmatprep.subr.mxu0 0.0
    %200 = vmatpush1.msra.mxu0 0.0
    %201 = vmatprep.subr.mxu0 0.0
    %202 = vmatpush1.msra.mxu0 0.0
    %203 = vmatprep.subr.mxu0 0.0
    %204 = vmatpush1.msra.mxu0 0.0
    %205 = vmatprep.subr.mxu0 0.0
    %206 = vmatpush1.msra.mxu0 0.0
    %207 = vmatprep.subr.mxu0 0.0
    %208 = vmatpush1.msra.mxu0 0.0
    %209 = vmatprep.subr.mxu0 0.0
    %210 = vmatpush1.msra.mxu0 0.0
    %211 = vmatprep.subr.mxu0 0.0
    %212 = vmatpush1.msra.mxu0 0.0
    %213 = vmatprep.subr.mxu0 0.0
    %214 = vmatpush1.msra.mxu0 0.0
    %215 = vmatprep.subr.mxu0 0.0
    %216 = vmatpush1.msra.mxu0 0.0
    %217 = vmatprep.subr.mxu0 0.0
    %218 = vmatpush1.msra.mxu0 0.0
    %219 = vmatprep.subr.mxu0 0.0
    %220 = vmatpush1.msra.mxu0 0.0
    %221 = vmatprep.subr.mxu0 0.0
    %222 = vmatpush1.msra.mxu0 0.0
    %223 = vmatprep.subr.mxu0 0.0
    %224 = vmatpush1.msra.mxu0 0.0
    %225 = vmatprep.subr.mxu0 0.0
    %226 = vmatpush1.msra.mxu0 0.0
    %227 = vmatprep.mubr.f32.mxu0 0.0
    %228 = vmatmul.mubr.f32.gmra.mrb[0].mxu0 %v152
    %v229 = vpop.f32.mrb[0].mxu0
    %v230 = vadd.f32 %v133, %v229
    %v231 = vpop.f32.mrb[0].mxu0
    %232 = vmatprep.mubr.f32.mxu0 0.0
    %233 = vmatmul.mubr.f32.gmra.mrb[0].mxu0 %v155
    %v234 = vpop.f32.mrb[0].mxu0
    %v235 = vadd.f32 %v138, %v234
    %v236 = vpop.f32.mrb[0].mxu0
    %237 = vmatprep.mubr.f32.mxu0 0.0
    %238 = vmatmul.mubr.f32.gmra.mrb[0].mxu0 %v158
    %v239 = vpop.f32.mrb[0].mxu0
    %v240 = vadd.f32 %v143, %v239
    %v241 = vpop.f32.mrb[0].mxu0
    %242 = vmatprep.mubr.f32.mxu0 0.0
    %243 = vmatmul.mubr.f32.gmra.mrb[0].mxu0 %v161
    %v244 = vpop.f32.mrb[0].mxu0
    %v245 = vadd.f32 %v148, %v244
    %v246 = vpop.f32.mrb[0].mxu0
    %247 = vdwg.mxu0
    %v248 = vld [vmem:[%s4] sm:$0xff]
    %v249 = vld [vmem:[%s4 + $0x8] sm:$0xff]
    %v250 = vld [vmem:[%s4 + $0x10] sm:$0xff]
    %v251 = vld [vmem:[%s4 + $0x18] sm:$0xff]
    %253 = vset.pattern.permute.xlu0 0
    %254 = vperm.xlu0 %253, %v248
    %v255 = vpop.permute.xlu0 %254
    %258 = vset.pattern.permute.xlu0 0
    %259 = vperm.xlu0 %258, %v249
    %v260 = vpop.permute.xlu0 %259
    %263 = vset.pattern.permute.xlu0 0
    %264 = vperm.xlu0 %263, %v250
    %v265 = vpop.permute.xlu0 %264
    %268 = vset.pattern.permute.xlu0 0
    %269 = vperm.xlu0 %268, %v251
    %v270 = vpop.permute.xlu0 %269
    %v272 = vadd.f32 %v230, %v255
    %v273 = vadd.f32 %v235, %v260
    %v274 = vadd.f32 %v240, %v265
    %v275 = vadd.f32 %v245, %v270
    %v276 = vmax.f32 %v272, 0.0
    %v277 = vmax.f32 %v273, 0.0
    %v278 = vmax.f32 %v274, 0.0
    %v279 = vmax.f32 %v275, 0.0
    %v280 = vld [vmem:[%s5] sm:$0xff]
    %v281 = vld [vmem:[%s5 + $0x8] sm:$0xff]
    %v282 = vld [vmem:[%s5 + $0x10] sm:$0xff]
    %v283 = vld [vmem:[%s5 + $0x18] sm:$0xff]
    %v284 = vld [vmem:[%s6] sm:$0xff]
    %v285 = vld [vmem:[%s6 + $0x8] sm:$0xff]
    %v286 = vld [vmem:[%s6 + $0x10] sm:$0xff]
    %v287 = vld [vmem:[%s6 + $0x18] sm:$0xff]
    %289 = vset.pattern.permute.xlu0 0
    %290 = vperm.xlu0 %289, %v284
    %v291 = vpop.permute.xlu0 %290
    %294 = vset.pattern.permute.xlu0 0
    %295 = vperm.xlu0 %294, %v285
    %v296 = vpop.permute.xlu0 %295
    %299 = vset.pattern.permute.xlu0 0
    %300 = vperm.xlu0 %299, %v286
    %v301 = vpop.permute.xlu0 %300
    %304 = vset.pattern.permute.xlu0 0
    %305 = vperm.xlu0 %304, %v287
    %v306 = vpop.permute.xlu0 %305
    %vm308 = vcmask 261120
    %v310 = vsel %vm308, %v280, 0
    %v313 = vsel %vm308, %v281, 0
    %v316 = vsel %vm308, %v282, 0
    %v319 = vsel %vm308, %v283, 0
    %321 = vmatprep.subr.mxu0 0.0
    %322 = vmatpush1.msra.mxu0 %v276
    %323 = vmatprep.subr.mxu0 0.0
    %324 = vmatpush1.msra.mxu0 %v277
    %325 = vmatprep.subr.mxu0 0.0
    %326 = vmatpush1.msra.mxu0 %v278
    %327 = vmatprep.subr.mxu0 0.0
    %328 = vmatpush1.msra.mxu0 %v279
    %329 = vmatprep.subr.mxu0 0.0
    %330 = vmatpush1.msra.mxu0 0.0
    %331 = vmatprep.subr.mxu0 0.0
    %332 = vmatpush1.msra.mxu0 0.0
    %333 = vmatprep.subr.mxu0 0.0
    %334 = vmatpush1.msra.mxu0 0.0
    %335 = vmatprep.subr.mxu0 0.0
    %336 = vmatpush1.msra.mxu0 0.0
    %337 = vmatprep.subr.mxu0 0.0
    %338 = vmatpush1.msra.mxu0 0.0
    %339 = vmatprep.subr.mxu0 0.0
    %340 = vmatpush1.msra.mxu0 0.0
    %341 = vmatprep.subr.mxu0 0.0
    %342 = vmatpush1.msra.mxu0 0.0
    %343 = vmatprep.subr.mxu0 0.0
    %344 = vmatpush1.msra.mxu0 0.0
    %345 = vmatprep.subr.mxu0 0.0
    %346 = vmatpush1.msra.mxu0 0.0
    %347 = vmatprep.subr.mxu0 0.0
    %348 = vmatpush1.msra.mxu0 0.0
    %349 = vmatprep.subr.mxu0 0.0
    %350 = vmatpush1.msra.mxu0 0.0
    %351 = vmatprep.subr.mxu0 0.0
    %352 = vmatpush1.msra.mxu0 0.0
    %353 = vmatprep.subr.mxu0 0.0
    %354 = vmatpush1.msra.mxu0 0.0
    %355 = vmatprep.subr.mxu0 0.0
    %356 = vmatpush1.msra.mxu0 0.0
    %357 = vmatprep.subr.mxu0 0.0
    %358 = vmatpush1.msra.mxu0 0.0
    %359 = vmatprep.subr.mxu0 0.0
    %360 = vmatpush1.msra.mxu0 0.0
    %361 = vmatprep.subr.mxu0 0.0
    %362 = vmatpush1.msra.mxu0 0.0
    %363 = vmatprep.subr.mxu0 0.0
    %364 = vmatpush1.msra.mxu0 0.0
    %365 = vmatprep.subr.mxu0 0.0
    %366 = vmatpush1.msra.mxu0 0.0
    %367 = vmatprep.subr.mxu0 0.0
    %368 = vmatpush1.msra.mxu0 0.0
    %369 = vmatprep.subr.mxu0 0.0
    %370 = vmatpush1.msra.mxu0 0.0
    %371 = vmatprep.subr.mxu0 0.0
    %372 = vmatpush1.msra.mxu0 0.0
    %373 = vmatprep.subr.mxu0 0.0
    %374 = vmatpush1.msra.mxu0 0.0
    %375 = vmatprep.subr.mxu0 0.0
    %376 = vmatpush1.msra.mxu0 0.0
    %377 = vmatprep.subr.mxu0 0.0
    %378 = vmatpush1.msra.mxu0 0.0
    %379 = vmatprep.subr.mxu0 0.0
    %380 = vmatpush1.msra.mxu0 0.0
    %381 = vmatprep.subr.mxu0 0.0
    %382 = vmatpush1.msra.mxu0 0.0
    %383 = vmatprep.subr.mxu0 0.0
    %384 = vmatpush1.msra.mxu0 0.0
    %385 = vmatprep.mubr.f32.mxu0 0.0
    %386 = vmatmul.mubr.f32.gmra.mrb[0].mxu0 %v310
    %v387 = vpop.f32.mrb[0].mxu0
    %v388 = vadd.f32 %v291, %v387
    %v389 = vpop.f32.mrb[0].mxu0
    %390 = vmatprep.mubr.f32.mxu0 0.0
    %391 = vmatmul.mubr.f32.gmra.mrb[0].mxu0 %v313
    %v392 = vpop.f32.mrb[0].mxu0
    %v393 = vadd.f32 %v296, %v392
    %v394 = vpop.f32.mrb[0].mxu0
    %395 = vmatprep.mubr.f32.mxu0 0.0
    %396 = vmatmul.mubr.f32.gmra.mrb[0].mxu0 %v316
    %v397 = vpop.f32.mrb[0].mxu0
    %v398 = vadd.f32 %v301, %v397
    %v399 = vpop.f32.mrb[0].mxu0
    %400 = vmatprep.mubr.f32.mxu0 0.0
    %401 = vmatmul.mubr.f32.gmra.mrb[0].mxu0 %v319
    %v402 = vpop.f32.mrb[0].mxu0
    %v403 = vadd.f32 %v306, %v402
    %v404 = vpop.f32.mrb[0].mxu0
    %405 = vdwg.mxu0
    %v406 = vmax.f32 %v388, 0.0
    %v407 = vmax.f32 %v393, 0.0
    %v408 = vmax.f32 %v398, 0.0
    %v409 = vmax.f32 %v403, 0.0
    %v410 = vld [vmem:[%s7] sm:$0xff]
    %v411 = vld [vmem:[%s7 + $0x8] sm:$0xff]
    %v412 = vld [vmem:[%s7 + $0x10] sm:$0xff]
    %v413 = vld [vmem:[%s7 + $0x18] sm:$0xff]
    %v414 = vld [vmem:[%s8] sm:$0xff]
    %v415 = vld [vmem:[%s8 + $0x8] sm:$0xff]
    %v416 = vld [vmem:[%s8 + $0x10] sm:$0xff]
    %v417 = vld [vmem:[%s8 + $0x18] sm:$0xff]
    %419 = vset.pattern.permute.xlu0 0
    %420 = vperm.xlu0 %419, %v414
    %v421 = vpop.permute.xlu0 %420
    %424 = vset.pattern.permute.xlu0 0
    %425 = vperm.xlu0 %424, %v415
    %v426 = vpop.permute.xlu0 %425
    %429 = vset.pattern.permute.xlu0 0
    %430 = vperm.xlu0 %429, %v416
    %v431 = vpop.permute.xlu0 %430
    %434 = vset.pattern.permute.xlu0 0
    %435 = vperm.xlu0 %434, %v417
    %v436 = vpop.permute.xlu0 %435
    %v439 = vsel %vm308, %v410, 0
    %v442 = vsel %vm308, %v411, 0
    %v445 = vsel %vm308, %v412, 0
    %v448 = vsel %vm308, %v413, 0
    %450 = vmatprep.subr.mxu0 0.0
    %451 = vmatpush1.msra.mxu0 %v406
    %452 = vmatprep.subr.mxu0 0.0
    %453 = vmatpush1.msra.mxu0 %v407
    %454 = vmatprep.subr.mxu0 0.0
    %455 = vmatpush1.msra.mxu0 %v408
    %456 = vmatprep.subr.mxu0 0.0
    %457 = vmatpush1.msra.mxu0 %v409
    %458 = vmatprep.subr.mxu0 0.0
    %459 = vmatpush1.msra.mxu0 0.0
    %460 = vmatprep.subr.mxu0 0.0
    %461 = vmatpush1.msra.mxu0 0.0
    %462 = vmatprep.subr.mxu0 0.0
    %463 = vmatpush1.msra.mxu0 0.0
    %464 = vmatprep.subr.mxu0 0.0
    %465 = vmatpush1.msra.mxu0 0.0
    %466 = vmatprep.subr.mxu0 0.0
    %467 = vmatpush1.msra.mxu0 0.0
    %468 = vmatprep.subr.mxu0 0.0
    %469 = vmatpush1.msra.mxu0 0.0
    %470 = vmatprep.subr.mxu0 0.0
    %471 = vmatpush1.msra.mxu0 0.0
    %472 = vmatprep.subr.mxu0 0.0
    %473 = vmatpush1.msra.mxu0 0.0
    %474 = vmatprep.subr.mxu0 0.0
    %475 = vmatpush1.msra.mxu0 0.0
    %476 = vmatprep.subr.mxu0 0.0
    %477 = vmatpush1.msra.mxu0 0.0
    %478 = vmatprep.subr.mxu0 0.0
    %479 = vmatpush1.msra.mxu0 0.0
    %480 = vmatprep.subr.mxu0 0.0
    %481 = vmatpush1.msra.mxu0 0.0
    %482 = vmatprep.subr.mxu0 0.0
    %483 = vmatpush1.msra.mxu0 0.0
    %484 = vmatprep.subr.mxu0 0.0
    %485 = vmatpush1.msra.mxu0 0.0
    %486 = vmatprep.subr.mxu0 0.0
    %487 = vmatpush1.msra.mxu0 0.0
    %488 = vmatprep.subr.mxu0 0.0
    %489 = vmatpush1.msra.mxu0 0.0
    %490 = vmatprep.subr.mxu0 0.0
    %491 = vmatpush1.msra.mxu0 0.0
    %492 = vmatprep.subr.mxu0 0.0
    %493 = vmatpush1.msra.mxu0 0.0
    %494 = vmatprep.subr.mxu0 0.0
    %495 = vmatpush1.msra.mxu0 0.0
    %496 = vmatprep.subr.mxu0 0.0
    %497 = vmatpush1.msra.mxu0 0.0
    %498 = vmatprep.subr.mxu0 0.0
    %499 = vmatpush1.msra.mxu0 0.0
    %500 = vmatprep.subr.mxu0 0.0
    %501 = vmatpush1.msra.mxu0 0.0
    %502 = vmatprep.subr.mxu0 0.0
    %503 = vmatpush1.msra.mxu0 0.0
    %504 = vmatprep.subr.mxu0 0.0
    %505 = vmatpush1.msra.mxu0 0.0
    %506 = vmatprep.subr.mxu0 0.0
    %507 = vmatpush1.msra.mxu0 0.0
    %508 = vmatprep.subr.mxu0 0.0
    %509 = vmatpush1.msra.mxu0 0.0
    %510 = vmatprep.subr.mxu0 0.0
    %511 = vmatpush1.msra.mxu0 0.0
    %512 = vmatprep.subr.mxu0 0.0
    %513 = vmatpush1.msra.mxu0 0.0
    %514 = vmatprep.mubr.f32.mxu0 0.0
    %515 = vmatmul.mubr.f32.gmra.mrb[0].mxu0 %v439
    %v516 = vpop.f32.mrb[0].mxu0
    %v517 = vadd.f32 %v421, %v516
    %v518 = vpop.f32.mrb[0].mxu0
    %519 = vmatprep.mubr.f32.mxu0 0.0
    %520 = vmatmul.mubr.f32.gmra.mrb[0].mxu0 %v442
    %v521 = vpop.f32.mrb[0].mxu0
    %v522 = vadd.f32 %v426, %v521
    %v523 = vpop.f32.mrb[0].mxu0
    %524 = vmatprep.mubr.f32.mxu0 0.0
    %525 = vmatmul.mubr.f32.gmra.mrb[0].mxu0 %v445
    %v526 = vpop.f32.mrb[0].mxu0
    %v527 = vadd.f32 %v431, %v526
    %v528 = vpop.f32.mrb[0].mxu0
    %529 = vmatprep.mubr.f32.mxu0 0.0
    %530 = vmatmul.mubr.f32.gmra.mrb[0].mxu0 %v448
    %v531 = vpop.f32.mrb[0].mxu0
    %v532 = vadd.f32 %v436, %v531
    %v533 = vpop.f32.mrb[0].mxu0
    %534 = vdwg.mxu0
    %v535 = vmax.f32 %v517, 0.0
    %v536 = vmax.f32 %v522, 0.0
    %v537 = vmax.f32 %v527, 0.0
    %v538 = vmax.f32 %v532, 0.0
    %v539 = vld [vmem:[%s9] sm:$0x1]
    %v540 = vld [vmem:[#allocation2] sm:$0x1]
    %542 = vset.pattern.permute.xlu0 0
    %543 = vperm.xlu0 %542, %v540
    %v544 = vpop.permute.xlu0 %543
    %v546 = vlaneseq
    %v547 = vshrl.u32 %v546, 7
    %v548 = vsub.s32 0, %v547
    %v549 = vrot.slane %v544, %v548
    %v551 = vsel %vm308, %v539, 0
    %553 = vmatprep.subr.mxu0 0.0
    %554 = vmatpush1.msra.mxu0 %v535
    %555 = vmatprep.subr.mxu0 0.0
    %556 = vmatpush1.msra.mxu0 %v536
    %557 = vmatprep.subr.mxu0 0.0
    %558 = vmatpush1.msra.mxu0 %v537
    %559 = vmatprep.subr.mxu0 0.0
    %560 = vmatpush1.msra.mxu0 %v538
    %561 = vmatprep.subr.mxu0 0.0
    %562 = vmatpush1.msra.mxu0 0.0
    %563 = vmatprep.subr.mxu0 0.0
    %564 = vmatpush1.msra.mxu0 0.0
    %565 = vmatprep.subr.mxu0 0.0
    %566 = vmatpush1.msra.mxu0 0.0
    %567 = vmatprep.subr.mxu0 0.0
    %568 = vmatpush1.msra.mxu0 0.0
    %569 = vmatprep.subr.mxu0 0.0
    %570 = vmatpush1.msra.mxu0 0.0
    %571 = vmatprep.subr.mxu0 0.0
    %572 = vmatpush1.msra.mxu0 0.0
    %573 = vmatprep.subr.mxu0 0.0
    %574 = vmatpush1.msra.mxu0 0.0
    %575 = vmatprep.subr.mxu0 0.0
    %576 = vmatpush1.msra.mxu0 0.0
    %577 = vmatprep.subr.mxu0 0.0
    %578 = vmatpush1.msra.mxu0 0.0
    %579 = vmatprep.subr.mxu0 0.0
    %580 = vmatpush1.msra.mxu0 0.0
    %581 = vmatprep.subr.mxu0 0.0
    %582 = vmatpush1.msra.mxu0 0.0
    %583 = vmatprep.subr.mxu0 0.0
    %584 = vmatpush1.msra.mxu0 0.0
    %585 = vmatprep.subr.mxu0 0.0
    %586 = vmatpush1.msra.mxu0 0.0
    %587 = vmatprep.subr.mxu0 0.0
    %588 = vmatpush1.msra.mxu0 0.0
    %589 = vmatprep.subr.mxu0 0.0
    %590 = vmatpush1.msra.mxu0 0.0
    %591 = vmatprep.subr.mxu0 0.0
    %592 = vmatpush1.msra.mxu0 0.0
    %593 = vmatprep.subr.mxu0 0.0
    %594 = vmatpush1.msra.mxu0 0.0
    %595 = vmatprep.subr.mxu0 0.0
    %596 = vmatpush1.msra.mxu0 0.0
    %597 = vmatprep.subr.mxu0 0.0
    %598 = vmatpush1.msra.mxu0 0.0
    %599 = vmatprep.subr.mxu0 0.0
    %600 = vmatpush1.msra.mxu0 0.0
    %601 = vmatprep.subr.mxu0 0.0
    %602 = vmatpush1.msra.mxu0 0.0
    %603 = vmatprep.subr.mxu0 0.0
    %604 = vmatpush1.msra.mxu0 0.0
    %605 = vmatprep.subr.mxu0 0.0
    %606 = vmatpush1.msra.mxu0 0.0
    %607 = vmatprep.subr.mxu0 0.0
    %608 = vmatpush1.msra.mxu0 0.0
    %609 = vmatprep.subr.mxu0 0.0
    %610 = vmatpush1.msra.mxu0 0.0
    %611 = vmatprep.subr.mxu0 0.0
    %612 = vmatpush1.msra.mxu0 0.0
    %613 = vmatprep.subr.mxu0 0.0
    %614 = vmatpush1.msra.mxu0 0.0
    %615 = vmatprep.subr.mxu0 0.0
    %616 = vmatpush1.msra.mxu0 0.0
    %617 = vmatprep.mubr.f32.mxu0 0.0
    %618 = vmatmul.mubr.f32.gmra.mrb[0].mxu0 %v551
    %v619 = vpop.f32.mrb[0].mxu0
    %v620 = vadd.f32 %v549, %v619
    %v621 = vpop.f32.mrb[0].mxu0
    %622 = vdwg.mxu0
    %623 = vst [vmem:[#allocation3] sm:$0x1] %v620
    // Predicated region
    $region46: #{tpu_custom_call.1} parent=1 // pred_check
      _
    $region47: #{tpu_custom_call.1} parent=1 // pred_check_branch
      %625 = sbr.rel (0) target = $region49
    $region48: #{tpu_custom_call.1} parent=1 // pred_region
      %s627 = ssub.s32 16, 16
      %628 = vsyncadd [#allocation4], %s627
      %s630 = sshll.u32 [#allocation3], 4
      %s631 = int_to_ptr.vmem [resolvable:$true] %s630
      %633 = dma.vmem_to_hbm [thread:$0]  %s631, 16, %s11, [#allocation4]
    $region49: #{tpu_custom_call.1} parent=1 // pred_fallthru
      _
    // Predicated region
    $region50: #{tpu_custom_call.1} parent=1 // pred_check
      _
    $region51: #{tpu_custom_call.1} parent=1 // pred_check_branch
      %635 = sbr.rel (0) target = $region53
    $region52: #{tpu_custom_call.1} parent=1 // pred_region
      %636 = dma.done [#allocation4], 16
    $region53: #{tpu_custom_call.1} parent=1 // pred_fallthru
      _
    %637 = vsyncpa [#allocation4], 1

</llo_original>
